<compile_context>
chip_gen: v5e
topology: v5e:2x2
jax: 0.10.0
libtpu: 0.0.40
codegen_flags: <defaults>
</compile_context>

<pallas_src>
import jax
import jax.numpy as jnp
from jax.experimental import pallas as pl
from jax.experimental.pallas import tpu as pltpu

IN_FEATURES = 198


def _fused_affine_kernel(x_ref, w_ref, b_ref, o_ref):
    """One grid step: (TILE_B, 198) @ (198, 198) + (1, 198) on the MXU."""
    o_ref[...] = (
        jnp.dot(x_ref[...], w_ref[...], preferred_element_type=jnp.float32)
        + b_ref[...]
    ).astype(o_ref.dtype)


def collapse_params(params):
    """Fold the activation-free 6-layer chain into a single affine map.

    params: list of (w_t, b) with w_t shaped (in_features, out_features).
    Returns (W, b) such that forward(x) == x @ W + b exactly (up to fp rounding).
    """
    w = params[0][0]
    for w_t, _ in params[1:]:
        w = w @ w_t                       # (198, 198) after the full chain
    # Fused bias of the composed affine map = chain applied to the zero vector.
    b = jnp.zeros((1, IN_FEATURES), jnp.float32)
    for w_t, bias in params:
        b = b @ w_t + bias                # (1, 198)
    return w.astype(jnp.float32), b.astype(jnp.float32)


def _round_up(n, m):
    return ((n + m - 1) // m) * m


def autoencoder_forward(x, w_fused, b_fused, *, tile_b=512):
    """x: (B, 198) float32.  w_fused: (198, 198), b_fused: (1, 198)."""
    B, F = x.shape
    assert F == IN_FEATURES, F

    # Batch tile: large (>=512 when the batch allows it) to amortize the
    # ~0.35us/step grid overhead, but never larger than the (8-row aligned)
    # batch itself.  Rows feed the MXU M dimension; 8-row alignment keeps the
    # sublane tiling happy, 256-multiples keep v6e/v7x MXU passes full.
    tb = min(tile_b, _round_up(B, 8))
    b_pad = _round_up(B, tb)
    if b_pad != B:
        # Padded rows compute 0 @ W + b and are sliced off below.
        x = jnp.pad(x, ((0, b_pad - B), (0, 0)))

    grid = (b_pad // tb,)

    out = pl.pallas_call(
        _fused_affine_kernel,
        out_shape=jax.ShapeDtypeStruct((b_pad, F), x.dtype),
        grid=grid,
        in_specs=[
            pl.BlockSpec((tb, F), lambda i: (i, 0)),   # x: streamed per batch tile
            pl.BlockSpec((F, F), lambda i: (0, 0)),    # W: VMEM-resident across grid
            pl.BlockSpec((1, F), lambda i: (0, 0)),    # b: VMEM-resident across grid
        ],
        out_specs=pl.BlockSpec((tb, F), lambda i: (i, 0)),
        compiler_params=pltpu.CompilerParams(
            dimension_semantics=("parallel",),         # shard batch across TCs (v7x)
        ),
    )(x, w_fused, b_fused)

    return out[:B]


def init_params(key):
    """Deterministic init mimicking PyTorch nn.Linear default U[-1/sqrt(fan_in), +]."""
    dims = [(198, 90), (90, 40), (40, 20), (20, 40), (40, 90), (90, 198)]
    params = []
    for (fan_in, fan_out) in dims:
        key, kw, kb = jax.random.split(key, 3)
        bound = 1.0 / jnp.sqrt(fan_in)
        # weight stored already transposed: (in_features, out_features)
        w_t = jax.random.uniform(kw, (fan_in, fan_out), jnp.float32,
                                 minval=-bound, maxval=bound)
        b = jax.random.uniform(kb, (1, fan_out), jnp.float32,
                               minval=-bound, maxval=bound)
        params.append((w_t, b))
    return params


def reference_forward(x, params):
    """Layer-by-layer f32 reference matching the original PyTorch module."""
    h = x
    for w_t, b in params:
        h = h @ w_t + b
    return h


if __name__ == "__main__":
    key = jax.random.PRNGKey(0)
    key, kx = jax.random.split(key)

    B = 8
    x = jax.random.normal(kx, (B, IN_FEATURES), jnp.float32)
    params = init_params(key)

    # One-time collapse of the 6 affine layers (outside the kernel).
    w_fused, b_fused = collapse_params(params)

    out = autoencoder_forward(x, w_fused, b_fused)
    out = jax.block_until_ready(out)

    ref = reference_forward(x, params)
    assert out.shape == (B, IN_FEATURES), out.shape
    assert jnp.allclose(out, ref, atol=1e-4, rtol=1e-4), "mismatch vs JAX reference"

    print("KERNEL_OK")
</pallas_src>

<mosaic_0001>
module attributes {stable_mosaic.version = 11 : i64} {
  func.func @_fused_affine_kernel(%arg0: i32, %arg1: memref<8x198xf32, #tpu.memory_space<vmem>>, %arg2: memref<198x198xf32, #tpu.memory_space<vmem>>, %arg3: memref<1x198xf32, #tpu.memory_space<vmem>>, %arg4: memref<8x198xf32, #tpu.memory_space<vmem>>) attributes {dimension_semantics = [#tpu.dimension_semantics<parallel>], iteration_bounds = array<i64: 1>, scalar_prefetch = 0 : i64, scratch_operands = 0 : i64, tpu.core_type = #tpu.core_type<tc>, window_params = [{transform_indices = @transform_0, window_bounds = array<i64: 8, 198>}, {pipeline_mode = #tpu.pipeline_mode<synchronous>, transform_indices = @transform_1, window_bounds = array<i64: 198, 198>}, {pipeline_mode = #tpu.pipeline_mode<synchronous>, transform_indices = @transform_2, window_bounds = array<i64: 1, 198>}, {transform_indices = @transform_3, window_bounds = array<i64: 8, 198>}]} {
    %c0 = arith.constant 0 : index
    %c0_0 = arith.constant 0 : index
    %0 = vector.load %arg1[%c0, %c0_0] : memref<8x198xf32, #tpu.memory_space<vmem>>, vector<8x198xf32>
    %c0_1 = arith.constant 0 : index
    %c0_2 = arith.constant 0 : index
    %1 = vector.load %arg2[%c0_1, %c0_2] : memref<198x198xf32, #tpu.memory_space<vmem>>, vector<198x198xf32>
    %cst = arith.constant dense<0.000000e+00> : vector<8x198xf32>
    %2 = tpu.matmul %0, %1, %cst {dimension_numbers = #tpu.dot_dimension_numbers<[1], [0], [0], [1], [0, 0, 1, 1], [], []>} : vector<8x198xf32>, vector<198x198xf32>, vector<8x198xf32> -> vector<8x198xf32>
    %c0_3 = arith.constant 0 : index
    %c0_4 = arith.constant 0 : index
    %3 = vector.load %arg3[%c0_3, %c0_4] : memref<1x198xf32, #tpu.memory_space<vmem>>, vector<1x198xf32>
    %4 = vector.broadcast %3 : vector<1x198xf32> to vector<8x198xf32>
    %5 = arith.addf %2, %4 : vector<8x198xf32>
    %c0_5 = arith.constant 0 : index
    %c0_6 = arith.constant 0 : index
    %6 = vector.load %arg4[%c0_5, %c0_6] : memref<8x198xf32, #tpu.memory_space<vmem>>, vector<8x198xf32>
    tpu.vector_store %arg4[%c0_5, %c0_6], %5 {strides = array<i32>} : memref<8x198xf32, #tpu.memory_space<vmem>>, vector<8x198xf32>,
    return
  }
  func.func @transform_0(%arg0: i32) -> (i32, i32) {
    %c0_i32 = arith.constant 0 : i32
    %c0_i32_0 = arith.constant 0 : i32
    return %arg0, %c0_i32 : i32, i32
  }
  func.func @transform_1(%arg0: i32) -> (i32, i32) {
    %c0_i32 = arith.constant 0 : i32
    %c0_i32_0 = arith.constant 0 : i32
    %c0_i32_1 = arith.constant 0 : i32
    return %c0_i32, %c0_i32_0 : i32, i32
  }
  func.func @transform_2(%arg0: i32) -> (i32, i32) {
    %c0_i32 = arith.constant 0 : i32
    %c0_i32_0 = arith.constant 0 : i32
    %c0_i32_1 = arith.constant 0 : i32
    return %c0_i32, %c0_i32_0 : i32, i32
  }
  func.func @transform_3(%arg0: i32) -> (i32, i32) {
    %c0_i32 = arith.constant 0 : i32
    %c0_i32_0 = arith.constant 0 : i32
    return %arg0, %c0_i32 : i32, i32
  }
}

</mosaic_0001>

<llo_original>
// kernel: tpu_custom_call.1
$region0: #{tpu_custom_call.1}
  #allocation0 [shape = 'u32[]', space=smem, size = 0x4, offset = 0x4, fixed_abs, tag = 'smem constant byte address 0x4 - core index']
  #allocation1 [shape = 'u32[72,128]{1,0:T(1,128)}', space=vmem, size = 0x9000, scoped, tag = 'internal scratch']
  %s0 = inlined_call_operand.hbm [shape: f32[8,198], index: 0, kind: input, shape index: {}]
  %s1 = inlined_call_operand.hbm [shape: f32[198,198], index: 1, kind: input, shape index: {}]
  %s2 = inlined_call_operand.hbm [shape: f32[1,198], index: 2, kind: input, shape index: {}]
  %s3 = inlined_call_operand.hbm [shape: f32[8,198], index: 3, kind: output, shape index: {}]
  %s4 = sld [smem:[#allocation0]]
  $region34: #{tpu_custom_call.1} parent=0
    _
  %s6 = ssub.s32 1, %s4
  %s7 = scalar_select 0, %s6, %s4
  $region1: #{tpu_custom_call.1} parent=0
    #allocation2 [shape = 'u8[8192]{0}', space=vmem, size = 0x2000, scoped, tag = 'input window, operand 0, single buffered']
    #allocation3 [shape = 's32[1]{0}', space=sflag, size = 0x4, scoped, tag = 'scoped memory for tpu_custom_call.1']
    #allocation4 [shape = 's32[1]{0}', space=sflag, size = 0x4, scoped, tag = 'scoped memory for tpu_custom_call.1']
    #allocation5 [shape = 'u8[204800]{0}', space=vmem, size = 0x32000, scoped, tag = 'input window, operand 1, single buffered']
    #allocation6 [shape = 's32[1]{0}', space=sflag, size = 0x4, scoped, tag = 'scoped memory for tpu_custom_call.1']
    #allocation7 [shape = 'u8[1024]{0}', space=vmem, size = 0x400, scoped, tag = 'input window, operand 2, single buffered']
    #allocation8 [shape = 'u8[8192]{0}', space=vmem, size = 0x2000, scoped, tag = 'output window, operand 0, single buffered']
    %8 = vsyncpa [#allocation3], 0
    %9 = vsyncpa [#allocation6], 0
    %10 = vsyncpa [#allocation4], 0
    // Predicated region
    $region2: #{tpu_custom_call.1} parent=1 // pred_check
      _
    $region3: #{tpu_custom_call.1} parent=1 // pred_check_branch
      %12 = sbr.rel (0) target = $region5
    $region4: #{tpu_custom_call.1} parent=1 // pred_region
      %14 = vsyncadd [#allocation3], 0
      %s16 = sshll.u32 %s0, 4
      %s17 = int_to_ptr.hbm [resolvable:$true] %s16
      %s18 = sshll.u32 [#allocation2], 4
      %s19 = int_to_ptr.vmem [resolvable:$true] %s18
      %21 = dma.hbm_to_vmem [thread:$0]  %s17, 256, %s19, [#allocation3]
    $region5: #{tpu_custom_call.1} parent=1 // pred_fallthru
      _
    // Predicated region
    $region6: #{tpu_custom_call.1} parent=1 // pred_check
      _
    $region7: #{tpu_custom_call.1} parent=1 // pred_check_branch
      %23 = sbr.rel (0) target = $region9
    $region8: #{tpu_custom_call.1} parent=1 // pred_region
      %25 = vsyncadd [#allocation6], 0
      %s26 = sshll.u32 %s1, 4
      %s27 = int_to_ptr.hbm [resolvable:$true] %s26
      %s28 = sshll.u32 [#allocation5], 4
      %s29 = int_to_ptr.vmem [resolvable:$true] %s28
      %34 = dma.hbm_to_vmem [thread:$0]  %s27, 6400, %s29, [#allocation6], 256, 256, 16
    $region9: #{tpu_custom_call.1} parent=1 // pred_fallthru
      _
    // Predicated region
    $region10: #{tpu_custom_call.1} parent=1 // pred_check
      _
    $region11: #{tpu_custom_call.1} parent=1 // pred_check_branch
      %36 = sbr.rel (0) target = $region13
    $region12: #{tpu_custom_call.1} parent=1 // pred_region
      %38 = vsyncadd [#allocation6], 0
      %s40 = sshll.u32 %s2, 4
      %s41 = int_to_ptr.hbm [resolvable:$true] %s40
      %s42 = sshll.u32 [#allocation7], 4
      %s43 = int_to_ptr.vmem [resolvable:$true] %s42
      %45 = dma.hbm_to_vmem [thread:$0]  %s41, 32, %s43, [#allocation6]
    $region13: #{tpu_custom_call.1} parent=1 // pred_fallthru
      _
    // Predicated region
    $region14: #{tpu_custom_call.1} parent=1 // pred_check
      _
    $region15: #{tpu_custom_call.1} parent=1 // pred_check_branch
      %47 = sbr.rel (0) target = $region17
    $region16: #{tpu_custom_call.1} parent=1 // pred_region
      %49 = dma.done [#allocation3], 256
    $region17: #{tpu_custom_call.1} parent=1 // pred_fallthru
      _
    // Predicated region
    $region18: #{tpu_custom_call.1} parent=1 // pred_check
      _
    $region19: #{tpu_custom_call.1} parent=1 // pred_check_branch
      %51 = sbr.rel (0) target = $region21
    $region20: #{tpu_custom_call.1} parent=1 // pred_region
      %53 = dma.done [#allocation6], 6400
    $region21: #{tpu_custom_call.1} parent=1 // pred_fallthru
      _
    // Predicated region
    $region22: #{tpu_custom_call.1} parent=1 // pred_check
      _
    $region23: #{tpu_custom_call.1} parent=1 // pred_check_branch
      %55 = sbr.rel (0) target = $region25
    $region24: #{tpu_custom_call.1} parent=1 // pred_region
      %57 = dma.done [#allocation6], 32
    $region25: #{tpu_custom_call.1} parent=1 // pred_fallthru
      _
    %v58 = vld [vmem:[#allocation2] sm:$0xff]
    %v59 = vld [vmem:[#allocation2 + $0x8] sm:$0xff]
    %v60 = vld [vmem:[#allocation5] sm:$0xff]
    %v61 = vld [vmem:[#allocation5 + $0x8] sm:$0xff]
    %v62 = vld [vmem:[#allocation5 + $0x10] sm:$0xff]
    %v63 = vld [vmem:[#allocation5 + $0x18] sm:$0xff]
    %v64 = vld [vmem:[#allocation5 + $0x20] sm:$0xff]
    %v65 = vld [vmem:[#allocation5 + $0x28] sm:$0xff]
    %v66 = vld [vmem:[#allocation5 + $0x30] sm:$0xff]
    %v67 = vld [vmem:[#allocation5 + $0x38] sm:$0xff]
    %v68 = vld [vmem:[#allocation5 + $0x40] sm:$0xff]
    %v69 = vld [vmem:[#allocation5 + $0x48] sm:$0xff]
    %v70 = vld [vmem:[#allocation5 + $0x50] sm:$0xff]
    %v71 = vld [vmem:[#allocation5 + $0x58] sm:$0xff]
    %v72 = vld [vmem:[#allocation5 + $0x60] sm:$0xff]
    %v73 = vld [vmem:[#allocation5 + $0x68] sm:$0xff]
    %v74 = vld [vmem:[#allocation5 + $0x70] sm:$0xff]
    %v75 = vld [vmem:[#allocation5 + $0x78] sm:$0xff]
    %v76 = vld [vmem:[#allocation5 + $0x80] sm:$0xff]
    %v77 = vld [vmem:[#allocation5 + $0x88] sm:$0xff]
    %v78 = vld [vmem:[#allocation5 + $0x90] sm:$0xff]
    %v79 = vld [vmem:[#allocation5 + $0x98] sm:$0xff]
    %v80 = vld [vmem:[#allocation5 + $0xa0] sm:$0xff]
    %v81 = vld [vmem:[#allocation5 + $0xa8] sm:$0xff]
    %v82 = vld [vmem:[#allocation5 + $0xb0] sm:$0xff]
    %v83 = vld [vmem:[#allocation5 + $0xb8] sm:$0xff]
    %v84 = vld [vmem:[#allocation5 + $0xc0] sm:$0xff]
    %v85 = vld [vmem:[#allocation5 + $0xc8] sm:$0xff]
    %v86 = vld [vmem:[#allocation5 + $0xd0] sm:$0xff]
    %v87 = vld [vmem:[#allocation5 + $0xd8] sm:$0xff]
    %v88 = vld [vmem:[#allocation5 + $0xe0] sm:$0xff]
    %v89 = vld [vmem:[#allocation5 + $0xe8] sm:$0xff]
    %v90 = vld [vmem:[#allocation5 + $0xf0] sm:$0xff]
    %v91 = vld [vmem:[#allocation5 + $0xf8] sm:$0xff]
    %v92 = vld [vmem:[#allocation5 + $0x100] sm:$0xff]
    %v93 = vld [vmem:[#allocation5 + $0x108] sm:$0xff]
    %v94 = vld [vmem:[#allocation5 + $0x110] sm:$0xff]
    %v95 = vld [vmem:[#allocation5 + $0x118] sm:$0xff]
    %v96 = vld [vmem:[#allocation5 + $0x120] sm:$0xff]
    %v97 = vld [vmem:[#allocation5 + $0x128] sm:$0xff]
    %v98 = vld [vmem:[#allocation5 + $0x130] sm:$0xff]
    %v99 = vld [vmem:[#allocation5 + $0x138] sm:$0xff]
    %v100 = vld [vmem:[#allocation5 + $0x140] sm:$0xff]
    %v101 = vld [vmem:[#allocation5 + $0x148] sm:$0xff]
    %v102 = vld [vmem:[#allocation5 + $0x150] sm:$0xff]
    %v103 = vld [vmem:[#allocation5 + $0x158] sm:$0xff]
    %v104 = vld [vmem:[#allocation5 + $0x160] sm:$0xff]
    %v105 = vld [vmem:[#allocation5 + $0x168] sm:$0xff]
    %v106 = vld [vmem:[#allocation5 + $0x170] sm:$0xff]
    %v107 = vld [vmem:[#allocation5 + $0x178] sm:$0xff]
    %v108 = vld [vmem:[#allocation5 + $0x180] sm:$0x3f]
    %v109 = vld [vmem:[#allocation5 + $0x188] sm:$0x3f]
    %v110 = vld [vmem:[#allocation7] sm:$0x3]
    %v112 = vperm.slane %v110, 0
    %v113 = vperm.slane %v110, 1
    %vm116 = vcmask 572416
    %v118 = vsel %vm116, %v59, 0
    %vm120 = vcmask 1045504
    %v122 = vsel %vm120, %v108, 0
    %v125 = vsel %vm120, %v109, 0
    %127 = vmatpush.msra.mxu0 %v90
    %128 = vmatpush.msra.mxu0 %v88
    %129 = vmatpush.msra.mxu0 %v86
    %130 = vmatpush.msra.mxu0 %v84
    %131 = vmatpush.msra.mxu0 %v82
    %132 = vmatpush.msra.mxu0 %v80
    %133 = vmatpush.msra.mxu0 %v78
    %134 = vmatpush.msra.mxu0 %v76
    %135 = vmatpush.msra.mxu0 %v74
    %136 = vmatpush.msra.mxu0 %v72
    %137 = vmatpush.msra.mxu0 %v70
    %138 = vmatpush.msra.mxu0 %v68
    %139 = vmatpush.msra.mxu0 %v66
    %140 = vmatpush.msra.mxu0 %v64
    %141 = vmatpush.msra.mxu0 %v62
    %142 = vmatpush.msra.mxu0 %v60
    %143 = vmatmul.f32.gmra.mxu0 %v58
    %v144 = vpop.f32.mrf.mxu0
    %v145 = vadd.f32 %v112, %v144
    %146 = vdwg.mxu0
    %147 = vmatpush.msra.mxu0 0.0
    %148 = vmatpush.msra.mxu0 0.0
    %149 = vmatpush.msra.mxu0 0.0
    %150 = vmatpush.msra.mxu0 0.0
    %151 = vmatpush.msra.mxu0 0.0
    %152 = vmatpush.msra.mxu0 0.0
    %153 = vmatpush.msra.mxu0 0.0
    %154 = vmatpush.msra.mxu0 %v122
    %155 = vmatpush.msra.mxu0 %v106
    %156 = vmatpush.msra.mxu0 %v104
    %157 = vmatpush.msra.mxu0 %v102
    %158 = vmatpush.msra.mxu0 %v100
    %159 = vmatpush.msra.mxu0 %v98
    %160 = vmatpush.msra.mxu0 %v96
    %161 = vmatpush.msra.mxu0 %v94
    %162 = vmatpush.msra.mxu0 %v92
    %163 = vmatmul.f32.gmra.mxu0 %v118
    %v164 = vpop.f32.mrf.mxu0
    %v165 = vadd.f32 %v145, %v164
    %166 = vdwg.mxu0
    %167 = vmatpush.msra.mxu0 %v91
    %168 = vmatpush.msra.mxu0 %v89
    %169 = vmatpush.msra.mxu0 %v87
    %170 = vmatpush.msra.mxu0 %v85
    %171 = vmatpush.msra.mxu0 %v83
    %172 = vmatpush.msra.mxu0 %v81
    %173 = vmatpush.msra.mxu0 %v79
    %174 = vmatpush.msra.mxu0 %v77
    %175 = vmatpush.msra.mxu0 %v75
    %176 = vmatpush.msra.mxu0 %v73
    %177 = vmatpush.msra.mxu0 %v71
    %178 = vmatpush.msra.mxu0 %v69
    %179 = vmatpush.msra.mxu0 %v67
    %180 = vmatpush.msra.mxu0 %v65
    %181 = vmatpush.msra.mxu0 %v63
    %182 = vmatpush.msra.mxu0 %v61
    %183 = vmatmul.f32.gmra.mxu0 %v58
    %v184 = vpop.f32.mrf.mxu0
    %v185 = vadd.f32 %v113, %v184
    %186 = vdwg.mxu0
    %187 = vmatpush.msra.mxu0 0.0
    %188 = vmatpush.msra.mxu0 0.0
    %189 = vmatpush.msra.mxu0 0.0
    %190 = vmatpush.msra.mxu0 0.0
    %191 = vmatpush.msra.mxu0 0.0
    %192 = vmatpush.msra.mxu0 0.0
    %193 = vmatpush.msra.mxu0 0.0
    %194 = vmatpush.msra.mxu0 %v125
    %195 = vmatpush.msra.mxu0 %v107
    %196 = vmatpush.msra.mxu0 %v105
    %197 = vmatpush.msra.mxu0 %v103
    %198 = vmatpush.msra.mxu0 %v101
    %199 = vmatpush.msra.mxu0 %v99
    %200 = vmatpush.msra.mxu0 %v97
    %201 = vmatpush.msra.mxu0 %v95
    %202 = vmatpush.msra.mxu0 %v93
    %203 = vmatmul.f32.gmra.mxu0 %v118
    %v204 = vpop.f32.mrf.mxu0
    %v205 = vadd.f32 %v185, %v204
    %206 = vdwg.mxu0
    %207 = vst [vmem:[#allocation8] sm:$0xff] %v165
    %208 = vst.msk [vmem:[#allocation8 + $0x8] sm:$0xff] %vm116, %v205
    // Predicated region
    $region26: #{tpu_custom_call.1} parent=1 // pred_check
      _
    $region27: #{tpu_custom_call.1} parent=1 // pred_check_branch
      %210 = sbr.rel (0) target = $region29
    $region28: #{tpu_custom_call.1} parent=1 // pred_region
      %212 = vsyncadd [#allocation4], 0
      %s214 = sshll.u32 [#allocation8], 4
      %s215 = int_to_ptr.vmem [resolvable:$true] %s214
      %s216 = sshll.u32 %s3, 4
      %s217 = int_to_ptr.hbm [resolvable:$true] %s216
      %219 = dma.vmem_to_hbm [thread:$0]  %s215, 256, %s217, [#allocation4]
    $region29: #{tpu_custom_call.1} parent=1 // pred_fallthru
      _
    // Predicated region
    $region30: #{tpu_custom_call.1} parent=1 // pred_check
      _
    $region31: #{tpu_custom_call.1} parent=1 // pred_check_branch
      %221 = sbr.rel (0) target = $region33
    $region32: #{tpu_custom_call.1} parent=1 // pred_region
      %223 = dma.done [#allocation4], 256
    $region33: #{tpu_custom_call.1} parent=1 // pred_fallthru
      _
    %224 = vsyncpa [#allocation3], 1
    %225 = vsyncpa [#allocation6], 1
    %226 = vsyncpa [#allocation4], 1

</llo_original>
